<compile_context>
chip_gen: v7x
topology: tpu7x:2x2x1
jax: 0.10.0
libtpu: 0.0.40
codegen_flags: <defaults>
</compile_context>

<pallas_src>
import math

import jax
import jax.numpy as jnp
from jax.experimental import pallas as pl
from jax.experimental.pallas import tpu as pltpu


def _graphsage_kernel(self_ref, mask_ref, feat_ref, wes_ref, wen_ref, wcls_ref,
                      out_ref, neigh_acc):
    k = pl.program_id(1)

    @pl.when(k == 0)
    def _():
        neigh_acc[...] = jnp.zeros_like(neigh_acc)

    # Mean aggregation partial sum over this N tile (MeanAggregator hot path).
    neigh_acc[...] += jnp.dot(mask_ref[...], feat_ref[...],
                              preferred_element_type=jnp.float32)

    @pl.when(k == pl.num_programs(1) - 1)
    def _():
        # Encoder without concat: relu(self @ W_self^T + neigh @ W_neigh^T).
        h = jnp.dot(self_ref[...], wes_ref[...], preferred_element_type=jnp.float32)
        h = h + jnp.dot(neigh_acc[...].astype(wen_ref.dtype), wen_ref[...],
                        preferred_element_type=jnp.float32)
        h = jnp.maximum(h, 0.0)
        # Classifier head: (W_cls @ embeds).T == h @ W_cls^T (lane-dense padded output).
        out_ref[...] = jnp.dot(h.astype(wcls_ref.dtype), wcls_ref[...],
                               preferred_element_type=jnp.float32)


def supervised_graphsage_forward(self_feats, mean_mask, features, w_enc, w_cls,
                                 *, tb=128, tn=128):
    """Returns scores.t() with shape (batch, num_classes)."""
    B, F = self_feats.shape
    N = features.shape[0]
    D, twoF = w_enc.shape
    C = w_cls.shape[0]
    assert twoF == 2 * F and w_cls.shape[1] == D and mean_mask.shape == (B, N)

    bf = jnp.bfloat16

    # --- wrapper-side layout plumbing (one-time) ---
    # Split + transpose encoder weight: no concat inside the kernel.
    w_enc_self_t = jnp.transpose(w_enc[:, :F]).astype(bf)    # (F, D)
    w_enc_neigh_t = jnp.transpose(w_enc[:, F:]).astype(bf)   # (F, D)

    # Lane-dense classifier: pad classes up to a multiple of 128.
    c_pad = ((C + 127) // 128) * 128
    w_cls_t = jnp.zeros((D, c_pad), bf).at[:, :C].set(jnp.transpose(w_cls).astype(bf))

    # Pad batch to the MXU-friendly tile TB and N to the streaming tile TN.
    b_pad = ((B + tb - 1) // tb) * tb
    n_pad = ((N + tn - 1) // tn) * tn
    self_p = jnp.zeros((b_pad, F), bf).at[:B, :].set(self_feats.astype(bf))
    mask_p = jnp.zeros((b_pad, n_pad), bf).at[:B, :N].set(mean_mask.astype(bf))
    feat_p = jnp.zeros((n_pad, F), bf).at[:N, :].set(features.astype(bf))
    # TODO(synk): self rows could instead be gathered in-kernel from the feature table
    # via scalar-prefetched node ids (pl.Element row gather) to drop one HBM copy.

    grid = (b_pad // tb, n_pad // tn)

    out = pl.pallas_call(
        _graphsage_kernel,
        out_shape=jax.ShapeDtypeStruct((b_pad, c_pad), jnp.float32),
        grid_spec=pltpu.PrefetchScalarGridSpec(
            num_scalar_prefetch=0,
            grid=grid,
            in_specs=[
                pl.BlockSpec((tb, F), lambda i, k: (i, 0)),      # self feats (batch tile)
                pl.BlockSpec((tb, tn), lambda i, k: (i, k)),     # mean mask  (batch x N tile)
                pl.BlockSpec((tn, F), lambda i, k: (k, 0)),      # features   (streamed over N)
                pl.BlockSpec((F, D), lambda i, k: (0, 0)),       # W_enc self half (resident)
                pl.BlockSpec((F, D), lambda i, k: (0, 0)),       # W_enc neigh half (resident)
                pl.BlockSpec((D, c_pad), lambda i, k: (0, 0)),   # W_cls^T padded (resident)
            ],
            out_specs=pl.BlockSpec((tb, c_pad), lambda i, k: (i, 0)),
            scratch_shapes=[pltpu.VMEM((tb, F), jnp.float32)],   # neigh accumulator
        ),
        compiler_params=pltpu.CompilerParams(
            dimension_semantics=("parallel", "arbitrary"),
        ),
    )(self_p, mask_p, feat_p, w_enc_self_t, w_enc_neigh_t, w_cls_t)

    return out[:B, :C]


def _xavier_uniform(key, shape):
    fan_out, fan_in = shape
    bound = math.sqrt(6.0 / (fan_in + fan_out))
    return jax.random.uniform(key, shape, jnp.float32, -bound, bound)


def _reference_f32(self_feats, mean_mask, features, w_enc, w_cls):
    """Pure f32 reference matching the PyTorch module."""
    neigh = mean_mask @ features
    combined = jnp.concatenate([self_feats, neigh], axis=1)
    embeds = jax.nn.relu(w_enc @ combined.T)       # (D, B)
    scores = w_cls @ embeds                        # (C, B)
    return scores.T


def _reference_kernel_numerics(self_feats, mean_mask, features, w_enc, w_cls):
    """Same math with the kernel's bf16-operand / f32-accumulate numerics."""
    F = self_feats.shape[1]
    bf = jnp.bfloat16
    s = self_feats.astype(bf)
    m = mean_mask.astype(bf)
    x = features.astype(bf)
    wes = jnp.transpose(w_enc[:, :F]).astype(bf)
    wen = jnp.transpose(w_enc[:, F:]).astype(bf)
    wct = jnp.transpose(w_cls).astype(bf)
    neigh = jnp.dot(m, x, preferred_element_type=jnp.float32)
    h = jnp.dot(s, wes, preferred_element_type=jnp.float32)
    h = h + jnp.dot(neigh.astype(bf), wen, preferred_element_type=jnp.float32)
    h = jnp.maximum(h, 0.0)
    return jnp.dot(h.astype(bf), wct, preferred_element_type=jnp.float32)


if __name__ == "__main__":
    key = jax.random.PRNGKey(0)
    k_feat, k_adj, k_enc, k_cls = jax.random.split(key, 4)

    # Small graph: N nodes with F-dim features, batch of B query nodes.
    N, F, B = 256, 64, 32
    embed_dim, num_classes = 128, 7

    features = jax.random.normal(k_feat, (N, F), jnp.float32)

    # Batch nodes are the first B node ids; their self features:
    node_ids = jnp.arange(B)
    self_feats = features[node_ids]

    # Deterministic sampled-neighbor mean mask (rows sum to 1), as MeanAggregator builds.
    logits = jax.random.uniform(k_adj, (B, N), jnp.float32)
    adj = (logits > 0.9).astype(jnp.float32) + jnp.eye(N, dtype=jnp.float32)[node_ids]
    mean_mask = adj / jnp.sum(adj, axis=1, keepdims=True)

    # Encoder weight (embed_dim, 2F) and classifier weight (num_classes, embed_dim),
    # xavier_uniform like nn.init.xavier_uniform_.
    w_enc = _xavier_uniform(k_enc, (embed_dim, 2 * F))
    w_cls = _xavier_uniform(k_cls, (num_classes, embed_dim))

    out = supervised_graphsage_forward(self_feats, mean_mask, features, w_enc, w_cls)
    out = jax.block_until_ready(out)
    assert out.shape == (B, num_classes)

    # Tight check against the same bf16-operand / f32-accumulate numerics.
    ref_bf16 = _reference_kernel_numerics(self_feats, mean_mask, features, w_enc, w_cls)
    assert jnp.allclose(out, ref_bf16, atol=2e-3, rtol=2e-3), \
        float(jnp.max(jnp.abs(out - ref_bf16)))

    # Sanity check against the full-f32 PyTorch-equivalent reference (bf16 inputs -> looser).
    ref_f32 = _reference_f32(self_feats, mean_mask, features, w_enc, w_cls)
    assert jnp.allclose(out, ref_f32, atol=2e-1, rtol=1e-1), \
        float(jnp.max(jnp.abs(out - ref_f32)))

    print("KERNEL_OK")
</pallas_src>

<mosaic_0001>
module attributes {stable_mosaic.version = 11 : i64} {
  func.func @_graphsage_kernel(%arg0: i32, %arg1: i32, %arg2: memref<128x64xbf16, #tpu.memory_space<vmem>>, %arg3: memref<128x128xbf16, #tpu.memory_space<vmem>>, %arg4: memref<128x64xbf16, #tpu.memory_space<vmem>>, %arg5: memref<64x128xbf16, #tpu.memory_space<vmem>>, %arg6: memref<64x128xbf16, #tpu.memory_space<vmem>>, %arg7: memref<128x128xbf16, #tpu.memory_space<vmem>>, %arg8: memref<128x128xf32, #tpu.memory_space<vmem>>, %arg9: memref<128x64xf32, #tpu.memory_space<vmem>>) attributes {dimension_semantics = [#tpu.dimension_semantics<parallel>, #tpu.dimension_semantics<arbitrary>], iteration_bounds = array<i64: 1, 2>, scalar_prefetch = 0 : i64, scratch_operands = 1 : i64, tpu.core_type = #tpu.core_type<tc>, window_params = [{transform_indices = @transform_0, window_bounds = array<i64: 128, 64>}, {transform_indices = @transform_1, window_bounds = array<i64: 128, 128>}, {transform_indices = @transform_2, window_bounds = array<i64: 128, 64>}, {pipeline_mode = #tpu.pipeline_mode<synchronous>, transform_indices = @transform_3, window_bounds = array<i64: 64, 128>}, {pipeline_mode = #tpu.pipeline_mode<synchronous>, transform_indices = @transform_4, window_bounds = array<i64: 64, 128>}, {pipeline_mode = #tpu.pipeline_mode<synchronous>, transform_indices = @transform_5, window_bounds = array<i64: 128, 128>}, {transform_indices = @transform_6, window_bounds = array<i64: 128, 128>}]} {
    %c0_i32 = arith.constant 0 : i32
    %0 = arith.cmpi eq, %arg1, %c0_i32 : i32
    %1 = arith.extui %0 : i1 to i32
    %c0_i32_0 = arith.constant 0 : i32
    %2 = arith.cmpi ne, %1, %c0_i32_0 : i32
    scf.if %2 {
      %cst_9 = arith.constant 0.000000e+00 : f32
      %12 = vector.broadcast %cst_9 : f32 to vector<128x64xf32>
      %c0_10 = arith.constant 0 : index
      %c0_11 = arith.constant 0 : index
      %13 = vector.load %arg9[%c0_10, %c0_11] : memref<128x64xf32, #tpu.memory_space<vmem>>, vector<128x64xf32>
      tpu.vector_store %arg9[%c0_10, %c0_11], %12 {strides = array<i32>} : memref<128x64xf32, #tpu.memory_space<vmem>>, vector<128x64xf32>,
    } else {
    }
    %c0 = arith.constant 0 : index
    %c0_1 = arith.constant 0 : index
    %3 = vector.load %arg9[%c0, %c0_1] : memref<128x64xf32, #tpu.memory_space<vmem>>, vector<128x64xf32>
    %c0_2 = arith.constant 0 : index
    %c0_3 = arith.constant 0 : index
    %4 = vector.load %arg3[%c0_2, %c0_3] : memref<128x128xbf16, #tpu.memory_space<vmem>>, vector<128x128xbf16>
    %c0_4 = arith.constant 0 : index
    %c0_5 = arith.constant 0 : index
    %5 = vector.load %arg4[%c0_4, %c0_5] : memref<128x64xbf16, #tpu.memory_space<vmem>>, vector<128x64xbf16>
    %cst = arith.constant dense<0.000000e+00> : vector<128x64xf32>
    %6 = tpu.matmul %4, %5, %cst {dimension_numbers = #tpu.dot_dimension_numbers<[1], [0], [0], [1], [0, 0, 1, 1], [], []>} : vector<128x128xbf16>, vector<128x64xbf16>, vector<128x64xf32> -> vector<128x64xf32>
    %7 = arith.addf %3, %6 : vector<128x64xf32>
    %c0_6 = arith.constant 0 : index
    %c0_7 = arith.constant 0 : index
    %8 = vector.load %arg9[%c0_6, %c0_7] : memref<128x64xf32, #tpu.memory_space<vmem>>, vector<128x64xf32>
    tpu.vector_store %arg9[%c0_6, %c0_7], %7 {strides = array<i32>} : memref<128x64xf32, #tpu.memory_space<vmem>>, vector<128x64xf32>,
    %c1_i32 = arith.constant 1 : i32
    %9 = arith.cmpi eq, %arg1, %c1_i32 : i32
    %10 = arith.extui %9 : i1 to i32
    %c0_i32_8 = arith.constant 0 : i32
    %11 = arith.cmpi ne, %10, %c0_i32_8 : i32
    scf.if %11 {
      %c0_9 = arith.constant 0 : index
      %c0_10 = arith.constant 0 : index
      %12 = vector.load %arg2[%c0_9, %c0_10] : memref<128x64xbf16, #tpu.memory_space<vmem>>, vector<128x64xbf16>
      %c0_11 = arith.constant 0 : index
      %c0_12 = arith.constant 0 : index
      %13 = vector.load %arg5[%c0_11, %c0_12] : memref<64x128xbf16, #tpu.memory_space<vmem>>, vector<64x128xbf16>
      %cst_13 = arith.constant dense<0.000000e+00> : vector<128x128xf32>
      %14 = tpu.matmul %12, %13, %cst_13 {dimension_numbers = #tpu.dot_dimension_numbers<[1], [0], [0], [1], [0, 0, 1, 1], [], []>} : vector<128x64xbf16>, vector<64x128xbf16>, vector<128x128xf32> -> vector<128x128xf32>
      %c0_14 = arith.constant 0 : index
      %c0_15 = arith.constant 0 : index
      %15 = vector.load %arg9[%c0_14, %c0_15] : memref<128x64xf32, #tpu.memory_space<vmem>>, vector<128x64xf32>
      %16 = arith.truncf %15 : vector<128x64xf32> to vector<128x64xbf16>
      %c0_16 = arith.constant 0 : index
      %c0_17 = arith.constant 0 : index
      %17 = vector.load %arg6[%c0_16, %c0_17] : memref<64x128xbf16, #tpu.memory_space<vmem>>, vector<64x128xbf16>
      %cst_18 = arith.constant dense<0.000000e+00> : vector<128x128xf32>
      %18 = tpu.matmul %16, %17, %cst_18 {dimension_numbers = #tpu.dot_dimension_numbers<[1], [0], [0], [1], [0, 0, 1, 1], [], []>} : vector<128x64xbf16>, vector<64x128xbf16>, vector<128x128xf32> -> vector<128x128xf32>
      %19 = arith.addf %14, %18 : vector<128x128xf32>
      %cst_19 = arith.constant 0.000000e+00 : f32
      %20 = vector.broadcast %cst_19 : f32 to vector<128x128xf32>
      %21 = arith.maximumf %19, %20 : vector<128x128xf32>
      %22 = arith.truncf %21 : vector<128x128xf32> to vector<128x128xbf16>
      %c0_20 = arith.constant 0 : index
      %c0_21 = arith.constant 0 : index
      %23 = vector.load %arg7[%c0_20, %c0_21] : memref<128x128xbf16, #tpu.memory_space<vmem>>, vector<128x128xbf16>
      %cst_22 = arith.constant dense<0.000000e+00> : vector<128x128xf32>
      %24 = tpu.matmul %22, %23, %cst_22 {dimension_numbers = #tpu.dot_dimension_numbers<[1], [0], [0], [1], [0, 0, 1, 1], [], []>} : vector<128x128xbf16>, vector<128x128xbf16>, vector<128x128xf32> -> vector<128x128xf32>
      %c0_23 = arith.constant 0 : index
      %c0_24 = arith.constant 0 : index
      %25 = vector.load %arg8[%c0_23, %c0_24] : memref<128x128xf32, #tpu.memory_space<vmem>>, vector<128x128xf32>
      tpu.vector_store %arg8[%c0_23, %c0_24], %24 {strides = array<i32>} : memref<128x128xf32, #tpu.memory_space<vmem>>, vector<128x128xf32>,
    } else {
    }
    return
  }
  func.func @transform_0(%arg0: i32, %arg1: i32) -> (i32, i32) {
    %c0_i32 = arith.constant 0 : i32
    %c0_i32_0 = arith.constant 0 : i32
    return %arg0, %c0_i32 : i32, i32
  }
  func.func @transform_1(%arg0: i32, %arg1: i32) -> (i32, i32) {
    %c0_i32 = arith.constant 0 : i32
    return %arg0, %arg1 : i32, i32
  }
  func.func @transform_2(%arg0: i32, %arg1: i32) -> (i32, i32) {
    %c0_i32 = arith.constant 0 : i32
    %c0_i32_0 = arith.constant 0 : i32
    return %arg1, %c0_i32 : i32, i32
  }
  func.func @transform_3(%arg0: i32, %arg1: i32) -> (i32, i32) {
    %c0_i32 = arith.constant 0 : i32
    %c0_i32_0 = arith.constant 0 : i32
    %c0_i32_1 = arith.constant 0 : i32
    return %c0_i32, %c0_i32_0 : i32, i32
  }
  func.func @transform_4(%arg0: i32, %arg1: i32) -> (i32, i32) {
    %c0_i32 = arith.constant 0 : i32
    %c0_i32_0 = arith.constant 0 : i32
    %c0_i32_1 = arith.constant 0 : i32
    return %c0_i32, %c0_i32_0 : i32, i32
  }
  func.func @transform_5(%arg0: i32, %arg1: i32) -> (i32, i32) {
    %c0_i32 = arith.constant 0 : i32
    %c0_i32_0 = arith.constant 0 : i32
    %c0_i32_1 = arith.constant 0 : i32
    return %c0_i32, %c0_i32_0 : i32, i32
  }
  func.func @transform_6(%arg0: i32, %arg1: i32) -> (i32, i32) {
    %c0_i32 = arith.constant 0 : i32
    %c0_i32_0 = arith.constant 0 : i32
    return %arg0, %c0_i32 : i32, i32
  }
}

</mosaic_0001>

<llo_original>
// kernel: tpu_custom_call.1
$region0: #{tpu_custom_call.1}
  #allocation0 [shape = 'u32[]', space=smem, size = 0x4, offset = 0x4, fixed_abs, tag = 'smem constant byte address 0x4 - core index']
  #allocation1 [shape = 'u32[144,128]{1,0:T(1,128)}', space=vmem, size = 0x12000, scoped, tag = 'internal scratch']
  #allocation2 [shape = 'f32[128,64]{1,0:T(8,128)}', space=vmem, size = 0x10000, scoped, tag = 'scratch operand']
  %s0 = inlined_call_operand.vmem [shape: bf16[128,64], index: 0, kind: input, shape index: {}]
  %s1 = inlined_call_operand.vmem [shape: bf16[128,256], index: 1, kind: input, shape index: {}]
  %s2 = inlined_call_operand.vmem [shape: bf16[256,64], index: 2, kind: input, shape index: {}]
  %s3 = inlined_call_operand.vmem [shape: bf16[64,128], index: 3, kind: input, shape index: {}]
  %s4 = inlined_call_operand.hbm [shape: bf16[64,128], index: 4, kind: input, shape index: {}]
  %s5 = inlined_call_operand.vmem [shape: bf16[128,128], index: 5, kind: input, shape index: {}]
  %s6 = inlined_call_operand.hbm [shape: f32[128,128], index: 6, kind: output, shape index: {}]
  %s7 = sld [smem:[#allocation0]]
  $region110: #{tpu_custom_call.1} parent=0
    _
  %s9 = ssub.s32 1, %s7
  %s10 = scalar_select 0, %s9, %s7
  $region1: #{tpu_custom_call.1} parent=0
    #allocation3 [shape = 'u8[65536]{0}', space=vmem, size = 0x10000, scoped, tag = 'input window, operand 1']
    #allocation4 [shape = 'u8[16384]{0}', space=vmem, size = 0x4000, scoped, tag = 'input window, operand 4, single buffered']
    #allocation5 [shape = 's32[2]{0}', space=sflag, size = 0x8, scoped, tag = 'scoped memory for tpu_custom_call.1']
    #allocation6 [shape = 's32[2]{0}', space=sflag, size = 0x8, scoped, tag = 'scoped memory for tpu_custom_call.1']
    #allocation7 [shape = 'u8[65536]{0}', space=vmem, size = 0x10000, scoped, tag = 'output window, operand 0, single buffered']
    %11 = vsyncpa [#allocation5], 0
    %12 = vsyncpa [#allocation6], 0
    loop: start=0, step=1, limit=4
    $region2: #{tpu_custom_call.1} parent=1 // loop_pre_header
      _
    $region3: #{tpu_custom_call.1} parent=1 // loop_header
      %s14 = sphi 0, %s18
      %p15 = scmp.ge.s32.totalorder %s14, 4
      %s21 = sphi 0, %s33
      %s22 = sphi 0, %s29
      %s23 = sphi 0, %s21
      %s24 = sphi 0, %s22
      %s25 = sphi 0, %s23
      %s26 = sphi 0, %s24
      %s36 = sphi 0, %s38
      %s39 = sphi 0, %s36
      %s40 = sphi 0, %s39
      %s56 = sphi 0, %s40
      %s64 = sphi 0, %s66
      %s67 = sphi 0, %s64
      %s68 = sphi 0, %s67
      %s84 = sphi 0, %s68
      %s90 = sphi 0, %s92
      %s93 = sphi 0, %s90
      %s94 = sphi 0, %s93
      %s110 = sphi 0, %s94
      %s114 = sphi 0, %s114
      %s116 = sphi 0, %s114
      %s117 = sphi 0, %s116
      %s131 = sphi 0, %s117
      %s135 = sphi 0, %s135
      %s137 = sphi 0, %s135
      %s138 = sphi 0, %s137
      %s152 = sphi 0, %s138
      %s156 = sphi 0, %s156
      %s158 = sphi 0, %s156
      %s159 = sphi 0, %s158
      %s173 = sphi 0, %s159
      %s179 = sphi 0, %s181
      %s182 = sphi 0, %s179
      %s183 = sphi 0, %s182
      %s199 = sphi 0, %s183
    $region4: #{tpu_custom_call.1} parent=1 // loop_header_branch
      %17 = sbr.rel (%p15) target = $region8
    $region5: #{tpu_custom_call.1} parent=1 // loop_body
      %s19 = ssub.s32 %s14, 1
      %s20 = ssub.s32 %s14, 2
      %s27 = sadd.s32 1, %s22
      %p28 = scmp.ge.s32.totalorder %s27, 2
      %s29 = scalar_select %p28, 0, %s27
      %s30 = sadd.s32 1, %s21
      %s31 = scalar_select %p28, %s30, %s21
      %p32 = scmp.ge.s32.totalorder %s31, 1
      %s33 = scalar_select %p32, 0, %s31
      %s34 = ssub.s32 %s21, %s33
      %p35 = scmp.eq.s32.totalorder %s34, 0
      %s37 = sadd.s32 %s36, 1
      %s38 = scalar_select %p35, %s36, %s37
      %p41 = pneg %p35
      %p42 = scmp.eq.s32.totalorder %s14, 1
      %p43 = por %p41, %p42
      %p44 = scmp.ne.s32.totalorder %s36, %s39
      %p45 = scmp.eq.s32.totalorder %s14, 0
      %p46 = por %p44, %p45
      %p47 = scmp.ne.s32.totalorder %s36, %s39
      %p48 = scmp.eq.s32.totalorder %s19, 1
      %p49 = por %p47, %p48
      %p50 = scmp.ne.s32.totalorder %s39, %s40
      %p51 = scmp.eq.s32.totalorder %s19, 0
      %p52 = por %p50, %p51
      %p53 = scmp.ne.s32.totalorder %s39, %s40
      %p54 = scmp.eq.s32.totalorder %s20, 1
      %p55 = por %p53, %p54
      %p57 = scmp.ne.s32.totalorder %s40, %s56
      %p58 = scmp.eq.s32.totalorder %s20, 0
      %p59 = por %p57, %p58
      %s60 = ssub.s32 %s21, %s33
      %s61 = ssub.s32 %s22, %s29
      %s62 = sor.u32 %s60, %s61
      %p63 = scmp.eq.s32.totalorder %s62, 0
      %s65 = sadd.s32 %s64, 1
      %s66 = scalar_select %p63, %s64, %s65
      %p69 = pneg %p63
      %p70 = scmp.eq.s32.totalorder %s14, 1
      %p71 = por %p69, %p70
      %p72 = scmp.ne.s32.totalorder %s64, %s67
      %p73 = scmp.eq.s32.totalorder %s14, 0
      %p74 = por %p72, %p73
      %p75 = scmp.ne.s32.totalorder %s64, %s67
      %p76 = scmp.eq.s32.totalorder %s19, 1
      %p77 = por %p75, %p76
      %p78 = scmp.ne.s32.totalorder %s67, %s68
      %p79 = scmp.eq.s32.totalorder %s19, 0
      %p80 = por %p78, %p79
      %p81 = scmp.ne.s32.totalorder %s67, %s68
      %p82 = scmp.eq.s32.totalorder %s20, 1
      %p83 = por %p81, %p82
      %p85 = scmp.ne.s32.totalorder %s68, %s84
      %p86 = scmp.eq.s32.totalorder %s20, 0
      %p87 = por %p85, %p86
      %s88 = ssub.s32 %s22, %s29
      %p89 = scmp.eq.s32.totalorder %s88, 0
      %s91 = sadd.s32 %s90, 1
      %s92 = scalar_select %p89, %s90, %s91
      %p95 = pneg %p89
      %p96 = scmp.eq.s32.totalorder %s14, 1
      %p97 = por %p95, %p96
      %p98 = scmp.ne.s32.totalorder %s90, %s93
      %p99 = scmp.eq.s32.totalorder %s14, 0
      %p100 = por %p98, %p99
      %p101 = scmp.ne.s32.totalorder %s90, %s93
      %p102 = scmp.eq.s32.totalorder %s19, 1
      %p103 = por %p101, %p102
      %p104 = scmp.ne.s32.totalorder %s93, %s94
      %p105 = scmp.eq.s32.totalorder %s19, 0
      %p106 = por %p104, %p105
      %p107 = scmp.ne.s32.totalorder %s93, %s94
      %p108 = scmp.eq.s32.totalorder %s20, 1
      %p109 = por %p107, %p108
      %p111 = scmp.ne.s32.totalorder %s94, %s110
      %p112 = scmp.eq.s32.totalorder %s20, 0
      %p113 = por %p111, %p112
      %s115 = sadd.s32 %s114, 1
      %p118 = scmp.eq.s32.totalorder %s14, 1
      %p119 = scmp.ne.s32.totalorder %s114, %s116
      %p120 = scmp.eq.s32.totalorder %s14, 0
      %p121 = por %p119, %p120
      %p122 = scmp.ne.s32.totalorder %s114, %s116
      %p123 = scmp.eq.s32.totalorder %s19, 1
      %p124 = por %p122, %p123
      %p125 = scmp.ne.s32.totalorder %s116, %s117
      %p126 = scmp.eq.s32.totalorder %s19, 0
      %p127 = por %p125, %p126
      %p128 = scmp.ne.s32.totalorder %s116, %s117
      %p129 = scmp.eq.s32.totalorder %s20, 1
      %p130 = por %p128, %p129
      %p132 = scmp.ne.s32.totalorder %s117, %s131
      %p133 = scmp.eq.s32.totalorder %s20, 0
      %p134 = por %p132, %p133
      %s136 = sadd.s32 %s135, 1
      %p139 = scmp.eq.s32.totalorder %s14, 1
      %p140 = scmp.ne.s32.totalorder %s135, %s137
      %p141 = scmp.eq.s32.totalorder %s14, 0
      %p142 = por %p140, %p141
      %p143 = scmp.ne.s32.totalorder %s135, %s137
      %p144 = scmp.eq.s32.totalorder %s19, 1
      %p145 = por %p143, %p144
      %p146 = scmp.ne.s32.totalorder %s137, %s138
      %p147 = scmp.eq.s32.totalorder %s19, 0
      %p148 = por %p146, %p147
      %p149 = scmp.ne.s32.totalorder %s137, %s138
      %p150 = scmp.eq.s32.totalorder %s20, 1
      %p151 = por %p149, %p150
      %p153 = scmp.ne.s32.totalorder %s138, %s152
      %p154 = scmp.eq.s32.totalorder %s20, 0
      %p155 = por %p153, %p154
      %s157 = sadd.s32 %s156, 1
      %p160 = scmp.eq.s32.totalorder %s14, 1
      %p161 = scmp.ne.s32.totalorder %s156, %s158
      %p162 = scmp.eq.s32.totalorder %s14, 0
      %p163 = por %p161, %p162
      %p164 = scmp.ne.s32.totalorder %s156, %s158
      %p165 = scmp.eq.s32.totalorder %s19, 1
      %p166 = por %p164, %p165
      %p167 = scmp.ne.s32.totalorder %s158, %s159
      %p168 = scmp.eq.s32.totalorder %s19, 0
      %p169 = por %p167, %p168
      %p170 = scmp.ne.s32.totalorder %s158, %s159
      %p171 = scmp.eq.s32.totalorder %s20, 1
      %p172 = por %p170, %p171
      %p174 = scmp.ne.s32.totalorder %s159, %s173
      %p175 = scmp.eq.s32.totalorder %s20, 0
      %p176 = por %p174, %p175
      %s177 = ssub.s32 %s21, %s33
      %p178 = scmp.eq.s32.totalorder %s177, 0
      %s180 = sadd.s32 %s179, 1
      %s181 = scalar_select %p178, %s179, %s180
      %p184 = pneg %p178
      %p185 = scmp.eq.s32.totalorder %s14, 1
      %p186 = por %p184, %p185
      %p187 = scmp.ne.s32.totalorder %s179, %s182
      %p188 = scmp.eq.s32.totalorder %s14, 0
      %p189 = por %p187, %p188
      %p190 = scmp.ne.s32.totalorder %s179, %s182
      %p191 = scmp.eq.s32.totalorder %s19, 1
      %p192 = por %p190, %p191
      %p193 = scmp.ne.s32.totalorder %s182, %s183
      %p194 = scmp.eq.s32.totalorder %s19, 0
      %p195 = por %p193, %p194
      %p196 = scmp.ne.s32.totalorder %s182, %s183
      %p197 = scmp.eq.s32.totalorder %s20, 1
      %p198 = por %p196, %p197
      %p200 = scmp.ne.s32.totalorder %s183, %s199
      %p201 = scmp.eq.s32.totalorder %s20, 0
      %p202 = por %p200, %p201
      %p203 = scmp.le.s32.totalorder 1, %s14
      %p204 = scmp.lt.s32.totalorder %s14, 3
      %p205 = pnand %p203, %p204
      %p206 = pneg %p205
      // Predicated region
      $region9: #{tpu_custom_call.1} parent=5 // pred_check
        _
      $region10: #{tpu_custom_call.1} parent=5 // pred_check_branch
        %208 = sbr.rel (%p205) target = $region12
      $region11: #{tpu_custom_call.1} parent=5 // pred_region
        %s209 = ssub.s32 %s14, 1
        // Predicated region
        $region13: #{tpu_custom_call.1} parent=11 // pred_check
          %p210 = pneg %p52
        $region14: #{tpu_custom_call.1} parent=11 // pred_check_branch
          %212 = sbr.rel (%p210) target = $region16
        $region15: #{tpu_custom_call.1} parent=11 // pred_region
          %s213 = smul.u32 16, %s23
          %p214 = scmp.lt.s32.totalorder %s213, 15
          %s215 = scalar_select %p214, %s213, 15
          %s216 = smul.addr %s215, 4
          %s217 = scalar_lea.vmem %s0, %s216
          %s218 = smul.u32 16, %s23
        $region16: #{tpu_custom_call.1} parent=11 // pred_fallthru
          _
        // Predicated region
        $region17: #{tpu_custom_call.1} parent=11 // pred_check
          %p219 = pneg %p127
        $region18: #{tpu_custom_call.1} parent=11 // pred_check_branch
          %221 = sbr.rel (%p219) target = $region20
        $region19: #{tpu_custom_call.1} parent=11 // pred_region
          _
        $region20: #{tpu_custom_call.1} parent=11 // pred_fallthru
          _
        // Predicated region
        $region21: #{tpu_custom_call.1} parent=11 // pred_check
          %p222 = pneg %p148
        $region22: #{tpu_custom_call.1} parent=11 // pred_check_branch
          %224 = sbr.rel (%p222) target = $region24
        $region23: #{tpu_custom_call.1} parent=11 // pred_region
          %s226 = ssub.s32 512, 512
          %227 = vsyncadd [#allocation5], %s226
          %s228 = sshll.u32 [#allocation4], 4
          %s229 = int_to_ptr.vmem [resolvable:$true] %s228
          %234 = dma.hbm_to_vmem [thread:$0]  %s4, 512, %s229, [#allocation5], 64, 64, 4
        $region24: #{tpu_custom_call.1} parent=11 // pred_fallthru
          _
        // Predicated region
        $region25: #{tpu_custom_call.1} parent=11 // pred_check
          %p235 = pneg %p169
        $region26: #{tpu_custom_call.1} parent=11 // pred_check_branch
          %237 = sbr.rel (%p235) target = $region28
        $region27: #{tpu_custom_call.1} parent=11 // pred_region
          _
        $region28: #{tpu_custom_call.1} parent=11 // pred_fallthru
          _
      $region12: #{tpu_custom_call.1} parent=5 // pred_fallthru
        _
      %p238 = scmp.lt.s32.totalorder %s14, 2
      // Predicated region
      $region29: #{tpu_custom_call.1} parent=5 // pred_check
        %p239 = pneg %p238
      $region30: #{tpu_custom_call.1} parent=5 // pred_check_branch
        %241 = sbr.rel (%p239) target = $region32
      $region31: #{tpu_custom_call.1} parent=5 // pred_region
        // Predicated region
        $region33: #{tpu_custom_call.1} parent=31 // pred_check
          %p242 = pneg %p74
        $region34: #{tpu_custom_call.1} parent=31 // pred_check_branch
          %244 = sbr.rel (%p242) target = $region36
        $region35: #{tpu_custom_call.1} parent=31 // pred_region
          %s245 = sand.u32 %s64, 1
          %s246 = sand.u32 %s64, 1
          %s247 = smul.addr %s246, 64
          %s248 = scalar_lea.vmem [#allocation3], %s247
          %s249 = smul.u32 16, %s21
          %s250 = smul.addr %s249, 2
          %s251 = sadd.s32 %s22, %s250
          %s252 = smul.addr %s251, 4
          %s253 = scalar_lea.vmem %s1, %s252
          // Predicated region
          $region37: #{tpu_custom_call.1} parent=35 // pred_check
            _
          $region38: #{tpu_custom_call.1} parent=35 // pred_check_branch
            %255 = sbr.rel (0) target = $region40
          $region39: #{tpu_custom_call.1} parent=35 // pred_region
            // Predicated region
            $region41: #{tpu_custom_call.1} parent=39 // pred_check
              _
            $region42: #{tpu_custom_call.1} parent=39 // pred_check_branch
              %257 = sbr.rel target = $region44
            $region43: #{tpu_custom_call.1} parent=39 // pred_region
              // Predicated region
              $region56: #{tpu_custom_call.1} parent=43 // pred_check
                _
              $region57: #{tpu_custom_call.1} parent=43 // pred_check_branch
                %302 = sbr.rel (0) target = $region59
              $region58: #{tpu_custom_call.1} parent=43 // pred_region
                loop: start=0, step=1, limit=1
                $region60: #{tpu_custom_call.1} parent=58 // loop_pre_header
                  _
                $region61: #{tpu_custom_call.1} parent=58 // loop_header
                  %s304 = sphi 0, %s308
                  %p305 = scmp.ge.s32.totalorder %s304, 1
                  %s309 = sphi %s253, %s253
                  %s310 = sphi %s248, %s248
                $region62: #{tpu_custom_call.1} parent=58 // loop_header_branch
                  %307 = sbr.rel (%p305) target = $region66
                $region63: #{tpu_custom_call.1} parent=58 // loop_body
                  _
                $region64: #{tpu_custom_call.1} parent=58 // loop_footer
                  %s308 = sadd.s32 1, %s304
                $region65: #{tpu_custom_call.1} parent=58 // loop_footer_branch
                  %303 = sbr.rel target = $region61
                $region66: #{tpu_custom_call.1} parent=58 // loop_exit
                  _
                loop: start=0, step=1, limit=1
                $region67: #{tpu_custom_call.1} parent=58 // loop_pre_header
                  _
                $region68: #{tpu_custom_call.1} parent=58 // loop_header
                  %s313 = sphi 0, %s317
                  %p314 = scmp.ge.s32.totalorder %s313, 1
                  %s318 = sphi %s253, %s253
                  %s319 = sphi %s248, %s248
                $region69: #{tpu_custom_call.1} parent=58 // loop_header_branch
                  %316 = sbr.rel (%p314) target = $region73
                $region70: #{tpu_custom_call.1} parent=58 // loop_body
                  %v320 = vld [vmem:[%s318] sm:$0xf]
                  %321 = vst [vmem:[%s319] sm:$0xf] %v320
                  %v322 = vld [vmem:[%s318 + $0x8] sm:$0xf]
                  %323 = vst [vmem:[%s319 + $0x4] sm:$0xf] %v322
                  %v324 = vld [vmem:[%s318 + $0x10] sm:$0xf]
                  %325 = vst [vmem:[%s319 + $0x8] sm:$0xf] %v324
                  %v326 = vld [vmem:[%s318 + $0x18] sm:$0xf]
                  %327 = vst [vmem:[%s319 + $0xc] sm:$0xf] %v326
                  %v328 = vld [vmem:[%s318 + $0x20] sm:$0xf]
                  %329 = vst [vmem:[%s319 + $0x10] sm:$0xf] %v328
                  %v330 = vld [vmem:[%s318 + $0x28] sm:$0xf]
                  %331 = vst [vmem:[%s319 + $0x14] sm:$0xf] %v330
                  %v332 = vld [vmem:[%s318 + $0x30] sm:$0xf]
                  %333 = vst [vmem:[%s319 + $0x18] sm:$0xf] %v332
                  %v334 = vld [vmem:[%s318 + $0x38] sm:$0xf]
                  %335 = vst [vmem:[%s319 + $0x1c] sm:$0xf] %v334
                  %v336 = vld [vmem:[%s318 + $0x40] sm:$0xf]
                  %337 = vst [vmem:[%s319 + $0x20] sm:$0xf] %v336
                  %v338 = vld [vmem:[%s318 + $0x48] sm:$0xf]
                  %339 = vst [vmem:[%s319 + $0x24] sm:$0xf] %v338
                  %v340 = vld [vmem:[%s318 + $0x50] sm:$0xf]
                  %341 = vst [vmem:[%s319 + $0x28] sm:$0xf] %v340
                  %v342 = vld [vmem:[%s318 + $0x58] sm:$0xf]
                  %343 = vst [vmem:[%s319 + $0x2c] sm:$0xf] %v342
                  %v344 = vld [vmem:[%s318 + $0x60] sm:$0xf]
                  %345 = vst [vmem:[%s319 + $0x30] sm:$0xf] %v344
                  %v346 = vld [vmem:[%s318 + $0x68] sm:$0xf]
                  %347 = vst [vmem:[%s319 + $0x34] sm:$0xf] %v346
                  %v348 = vld [vmem:[%s318 + $0x70] sm:$0xf]
                  %349 = vst [vmem:[%s319 + $0x38] sm:$0xf] %v348
                  %v350 = vld [vmem:[%s318 + $0x78] sm:$0xf]
                  %351 = vst [vmem:[%s319 + $0x3c] sm:$0xf] %v350
                $region71: #{tpu_custom_call.1} parent=58 // loop_footer
                  %s317 = sadd.s32 1, %s313
                $region72: #{tpu_custom_call.1} parent=58 // loop_footer_branch
                  %312 = sbr.rel target = $region68
                $region73: #{tpu_custom_call.1} parent=58 // loop_exit
                  _
              $region59: #{tpu_custom_call.1} parent=43 // pred_fallthru
                _
            $region44: #{tpu_custom_call.1} parent=39 // pred_fallthru
              _
            // Predicated region
            $region45: #{tpu_custom_call.1} parent=39 // pred_check
              _
            $region46: #{tpu_custom_call.1} parent=39 // pred_check_branch
              %259 = sbr.rel (0) target = $region48
            $region47: #{tpu_custom_call.1} parent=39 // pred_region
              loop: start=0, step=1, limit=1
              $region49: #{tpu_custom_call.1} parent=47 // loop_pre_header
                _
              $region50: #{tpu_custom_call.1} parent=47 // loop_header
                %s262 = sphi 0, %s266
                %p263 = scmp.ge.s32.totalorder %s262, 1
                %s267 = sphi %s253, %s253
                %s268 = sphi %s248, %s248
              $region51: #{tpu_custom_call.1} parent=47 // loop_header_branch
                %265 = sbr.rel (%p263) target = $region55
              $region52: #{tpu_custom_call.1} parent=47 // loop_body
                %v269 = vld [vmem:[%s267] sm:$0xf]
                %270 = vst [vmem:[%s268] sm:$0xf] %v269
                %v271 = vld [vmem:[%s267 + $0x8] sm:$0xf]
                %272 = vst [vmem:[%s268 + $0x4] sm:$0xf] %v271
                %v273 = vld [vmem:[%s267 + $0x10] sm:$0xf]
                %274 = vst [vmem:[%s268 + $0x8] sm:$0xf] %v273
                %v275 = vld [vmem:[%s267 + $0x18] sm:$0xf]
                %276 = vst [vmem:[%s268 + $0xc] sm:$0xf] %v275
                %v277 = vld [vmem:[%s267 + $0x20] sm:$0xf]
                %278 = vst [vmem:[%s268 + $0x10] sm:$0xf] %v277
                %v279 = vld [vmem:[%s267 + $0x28] sm:$0xf]
                %280 = vst [vmem:[%s268 + $0x14] sm:$0xf] %v279
                %v281 = vld [vmem:[%s267 + $0x30] sm:$0xf]
                %282 = vst [vmem:[%s268 + $0x18] sm:$0xf] %v281
                %v283 = vld [vmem:[%s267 + $0x38] sm:$0xf]
                %284 = vst [vmem:[%s268 + $0x1c] sm:$0xf] %v283
                %v285 = vld [vmem:[%s267 + $0x40] sm:$0xf]
                %286 = vst [vmem:[%s268 + $0x20] sm:$0xf] %v285
                %v287 = vld [vmem:[%s267 + $0x48] sm:$0xf]
                %288 = vst [vmem:[%s268 + $0x24] sm:$0xf] %v287
                %v289 = vld [vmem:[%s267 + $0x50] sm:$0xf]
                %290 = vst [vmem:[%s268 + $0x28] sm:$0xf] %v289
                %v291 = vld [vmem:[%s267 + $0x58] sm:$0xf]
                %292 = vst [vmem:[%s268 + $0x2c] sm:$0xf] %v291
                %v293 = vld [vmem:[%s267 + $0x60] sm:$0xf]
                %294 = vst [vmem:[%s268 + $0x30] sm:$0xf] %v293
                %v295 = vld [vmem:[%s267 + $0x68] sm:$0xf]
                %296 = vst [vmem:[%s268 + $0x34] sm:$0xf] %v295
                %v297 = vld [vmem:[%s267 + $0x70] sm:$0xf]
                %298 = vst [vmem:[%s268 + $0x38] sm:$0xf] %v297
                %v299 = vld [vmem:[%s267 + $0x78] sm:$0xf]
                %300 = vst [vmem:[%s268 + $0x3c] sm:$0xf] %v299
              $region53: #{tpu_custom_call.1} parent=47 // loop_footer
                %s266 = sadd.s32 1, %s262
              $region54: #{tpu_custom_call.1} parent=47 // loop_footer_branch
                %261 = sbr.rel target = $region50
              $region55: #{tpu_custom_call.1} parent=47 // loop_exit
                _
            $region48: #{tpu_custom_call.1} parent=39 // pred_fallthru
              _
          $region40: #{tpu_custom_call.1} parent=35 // pred_fallthru
            _
          %352 = vnop
        $region36: #{tpu_custom_call.1} parent=31 // pred_fallthru
          _
        // Predicated region
        $region74: #{tpu_custom_call.1} parent=31 // pred_check
          %p353 = pneg %p100
        $region75: #{tpu_custom_call.1} parent=31 // pred_check_branch
          %355 = sbr.rel (%p353) target = $region77
        $region76: #{tpu_custom_call.1} parent=31 // pred_region
          %s356 = smul.u32 16, %s22
          %p357 = scmp.lt.s32.totalorder %s356, 31
          %s358 = scalar_select %p357, %s356, 31
          %s359 = smul.addr %s358, 4
          %s360 = scalar_lea.vmem %s2, %s359
          %s361 = smul.u32 16, %s22
        $region77: #{tpu_custom_call.1} parent=31 // pred_fallthru
          _
      $region32: #{tpu_custom_call.1} parent=5 // pred_fallthru
        _
      %p362 = scmp.le.s32.totalorder 1, %s14
      %p363 = scmp.lt.s32.totalorder %s14, 3
      %p364 = pnand %p362, %p363
      %p365 = pneg %p364
      // Predicated region
      $region78: #{tpu_custom_call.1} parent=5 // pred_check
        _
      $region79: #{tpu_custom_call.1} parent=5 // pred_check_branch
        %367 = sbr.rel (%p364) target = $region81
      $region80: #{tpu_custom_call.1} parent=5 // pred_region
        %s368 = ssub.s32 %s14, 1
        %s369 = sand.u32 %s67, 1
        %s370 = sand.u32 %s67, 1
        %s371 = smul.addr %s370, 64
        %s372 = scalar_lea.vmem [#allocation3], %s371
        // Predicated region
        $region82: #{tpu_custom_call.1} parent=80 // pred_check
          %p373 = pneg %p80
        $region83: #{tpu_custom_call.1} parent=80 // pred_check_branch
          %375 = sbr.rel (%p373) target = $region85
        $region84: #{tpu_custom_call.1} parent=80 // pred_region
          _
        $region85: #{tpu_custom_call.1} parent=80 // pred_fallthru
          _
        // Predicated region
        $region86: #{tpu_custom_call.1} parent=80 // pred_check
          %p376 = pneg %p148
        $region87: #{tpu_custom_call.1} parent=80 // pred_check_branch
          %378 = sbr.rel (%p376) target = $region89
        $region88: #{tpu_custom_call.1} parent=80 // pred_region
          %379 = dma.done [#allocation5], 512
        $region89: #{tpu_custom_call.1} parent=80 // pred_fallthru
          _
        %s380 = smul.u32 16, %s23
        %p381 = scmp.lt.s32.totalorder %s380, 15
        %s382 = scalar_select %p381, %s380, 15
        %s383 = smul.addr %s382, 4
        %s384 = scalar_lea.vmem %s0, %s383
        %p385 = pneg %p52
        %p386 = pneg %p49
        %s387 = sand.u32 %s67, 1
        %s388 = sand.u32 %s67, 1
        %s389 = smul.addr %s388, 64
        %s390 = scalar_lea.vmem [#allocation3], %s389
        %p391 = pneg %p80
        %p392 = pneg %p77
        %s393 = smul.u32 16, %s24
        %p394 = scmp.lt.s32.totalorder %s393, 31
        %s395 = scalar_select %p394, %s393, 31
        %s396 = smul.addr %s395, 4
        %s397 = scalar_lea.vmem %s2, %s396
        %p398 = pneg %p106
        %p399 = pneg %p103
        %p400 = pneg %p127
        %p401 = pneg %p124
        %p402 = pneg %p148
        %p403 = pneg %p145
        %p404 = pneg %p169
        %p405 = pneg %p166
        %p406 = pneg %p195
        %p407 = pneg %p192
        %s408 = smul.u32 16, %s23
        %p409 = scmp.lt.s32.totalorder %s408, 15
        %s410 = scalar_select %p409, %s408, 15
        %s411 = smul.addr %s410, 4
        %s412 = scalar_lea.vmem %s0, %s411
        %s413 = smul.u32 16, %s23
        %s414 = smul.u32 16, %s23
        %s415 = smul.u32 16, %s24
        %p416 = scmp.lt.s32.totalorder %s415, 31
        %s417 = scalar_select %p416, %s415, 31
        %s418 = smul.addr %s417, 4
        %s419 = scalar_lea.vmem %s2, %s418
        %s420 = smul.u32 16, %s24
        %s421 = smul.u32 16, %s23
        %p423 = scmp.eq.s32.totalorder %s24, 0
        // Predicated region
        $region90: #{tpu_custom_call.1} parent=80 // pred_check
          %p424 = pneg %p423
        $region91: #{tpu_custom_call.1} parent=80 // pred_check_branch
          %426 = sbr.rel (%p424) target = $region93
        $region92: #{tpu_custom_call.1} parent=80 // pred_region
          %vm427 = vcmask 523264
          %428 = vst.msk [vmem:[#allocation2] sm:$0xff] %vm427, 0.0
          %429 = vst.msk [vmem:[#allocation2 + $0x8] sm:$0xff] %vm427, 0.0
          %430 = vst.msk [vmem:[#allocation2 + $0x10] sm:$0xff] %vm427, 0.0
          %431 = vst.msk [vmem:[#allocation2 + $0x18] sm:$0xff] %vm427, 0.0
          %432 = vst.msk [vmem:[#allocation2 + $0x20] sm:$0xff] %vm427, 0.0
          %433 = vst.msk [vmem:[#allocation2 + $0x28] sm:$0xff] %vm427, 0.0
          %434 = vst.msk [vmem:[#allocation2 + $0x30] sm:$0xff] %vm427, 0.0
          %435 = vst.msk [vmem:[#allocation2 + $0x38] sm:$0xff] %vm427, 0.0
          %436 = vst.msk [vmem:[#allocation2 + $0x40] sm:$0xff] %vm427, 0.0
          %437 = vst.msk [vmem:[#allocation2 + $0x48] sm:$0xff] %vm427, 0.0
          %438 = vst.msk [vmem:[#allocation2 + $0x50] sm:$0xff] %vm427, 0.0
          %439 = vst.msk [vmem:[#allocation2 + $0x58] sm:$0xff] %vm427, 0.0
          %440 = vst.msk [vmem:[#allocation2 + $0x60] sm:$0xff] %vm427, 0.0
          %441 = vst.msk [vmem:[#allocation2 + $0x68] sm:$0xff] %vm427, 0.0
          %442 = vst.msk [vmem:[#allocation2 + $0x70] sm:$0xff] %vm427, 0.0
          %443 = vst.msk [vmem:[#allocation2 + $0x78] sm:$0xff] %vm427, 0.0
        $region93: #{tpu_custom_call.1} parent=80 // pred_fallthru
          _
        %v444 = vld [vmem:[#allocation2] sm:$0xff]
        %v445 = vld [vmem:[#allocation2 + $0x8] sm:$0xff]
        %v446 = vld [vmem:[#allocation2 + $0x10] sm:$0xff]
        %v447 = vld [vmem:[#allocation2 + $0x18] sm:$0xff]
        %v448 = vld [vmem:[#allocation2 + $0x20] sm:$0xff]
        %v449 = vld [vmem:[#allocation2 + $0x28] sm:$0xff]
        %v450 = vld [vmem:[#allocation2 + $0x30] sm:$0xff]
        %v451 = vld [vmem:[#allocation2 + $0x38] sm:$0xff]
        %v452 = vld [vmem:[#allocation2 + $0x40] sm:$0xff]
        %v453 = vld [vmem:[#allocation2 + $0x48] sm:$0xff]
        %v454 = vld [vmem:[#allocation2 + $0x50] sm:$0xff]
        %v455 = vld [vmem:[#allocation2 + $0x58] sm:$0xff]
        %v456 = vld [vmem:[#allocation2 + $0x60] sm:$0xff]
        %v457 = vld [vmem:[#allocation2 + $0x68] sm:$0xff]
        %v458 = vld [vmem:[#allocation2 + $0x70] sm:$0xff]
        %v459 = vld [vmem:[#allocation2 + $0x78] sm:$0xff]
        %v460 = vld [vmem:[%s372] sm:$0xf]
        %v461 = vld [vmem:[%s372 + $0x4] sm:$0xf]
        %v462 = vld [vmem:[%s372 + $0x8] sm:$0xf]
        %v463 = vld [vmem:[%s372 + $0xc] sm:$0xf]
        %v464 = vld [vmem:[%s372 + $0x10] sm:$0xf]
        %v465 = vld [vmem:[%s372 + $0x14] sm:$0xf]
        %v466 = vld [vmem:[%s372 + $0x18] sm:$0xf]
        %v467 = vld [vmem:[%s372 + $0x1c] sm:$0xf]
        %v468 = vld [vmem:[%s372 + $0x20] sm:$0xf]
        %v469 = vld [vmem:[%s372 + $0x24] sm:$0xf]
        %v470 = vld [vmem:[%s372 + $0x28] sm:$0xf]
        %v471 = vld [vmem:[%s372 + $0x2c] sm:$0xf]
        %v472 = vld [vmem:[%s372 + $0x30] sm:$0xf]
        %v473 = vld [vmem:[%s372 + $0x34] sm:$0xf]
        %v474 = vld [vmem:[%s372 + $0x38] sm:$0xf]
        %v475 = vld [vmem:[%s372 + $0x3c] sm:$0xf]
        %v476 = vld [vmem:[%s419] sm:$0xf]
        %v477 = vld [vmem:[%s419 + $0x4] sm:$0xf]
        %v478 = vld [vmem:[%s419 + $0x8] sm:$0xf]
        %v479 = vld [vmem:[%s419 + $0xc] sm:$0xf]
        %v480 = vld [vmem:[%s419 + $0x10] sm:$0xf]
        %v481 = vld [vmem:[%s419 + $0x14] sm:$0xf]
        %v482 = vld [vmem:[%s419 + $0x18] sm:$0xf]
        %v483 = vld [vmem:[%s419 + $0x1c] sm:$0xf]
        %v484 = vld [vmem:[%s419 + $0x20] sm:$0xf]
        %v485 = vld [vmem:[%s419 + $0x24] sm:$0xf]
        %v486 = vld [vmem:[%s419 + $0x28] sm:$0xf]
        %v487 = vld [vmem:[%s419 + $0x2c] sm:$0xf]
        %v488 = vld [vmem:[%s419 + $0x30] sm:$0xf]
        %v489 = vld [vmem:[%s419 + $0x34] sm:$0xf]
        %v490 = vld [vmem:[%s419 + $0x38] sm:$0xf]
        %v491 = vld [vmem:[%s419 + $0x3c] sm:$0xf]
        %v508 = vunpack.c.l.b16 %v460
        %v509 = vunpack.c.l.b16 %v461
        %v510 = vunpack.c.l.b16 %v462
        %v511 = vunpack.c.l.b16 %v463
        %v512 = vunpack.c.l.b16 %v464
        %v513 = vunpack.c.l.b16 %v465
        %v514 = vunpack.c.l.b16 %v466
        %v515 = vunpack.c.l.b16 %v467
        %v516 = vunpack.c.l.b16 %v468
        %v517 = vunpack.c.l.b16 %v469
        %v518 = vunpack.c.l.b16 %v470
        %v519 = vunpack.c.l.b16 %v471
        %v520 = vunpack.c.l.b16 %v472
        %v521 = vunpack.c.l.b16 %v473
        %v522 = vunpack.c.l.b16 %v474
        %v523 = vunpack.c.l.b16 %v475
        %v524 = vpack.c.b16 %v509, %v508
        %v525 = vpack.c.b16 %v511, %v510
        %v526 = vpack.c.b16 %v513, %v512
        %v527 = vpack.c.b16 %v515, %v514
        %v528 = vpack.c.b16 %v517, %v516
        %v529 = vpack.c.b16 %v519, %v518
        %v530 = vpack.c.b16 %v521, %v520
        %v531 = vpack.c.b16 %v523, %v522
        %v556 = vunpack.c.l.b16 %v476
        %v557 = vunpack.c.l.b16 %v477
        %v558 = vunpack.c.l.b16 %v478
        %v559 = vunpack.c.l.b16 %v479
        %v560 = vunpack.c.l.b16 %v480
        %v561 = vunpack.c.l.b16 %v481
        %v562 = vunpack.c.l.b16 %v482
        %v563 = vunpack.c.l.b16 %v483
        %v564 = vunpack.c.l.b16 %v484
        %v565 = vunpack.c.l.b16 %v485
        %v566 = vunpack.c.l.b16 %v486
        %v567 = vunpack.c.l.b16 %v487
        %v568 = vunpack.c.l.b16 %v488
        %v569 = vunpack.c.l.b16 %v489
        %v570 = vunpack.c.l.b16 %v490
        %v571 = vunpack.c.l.b16 %v491
        %v572 = vpack.c.b16 %v557, %v556
        %v573 = vpack.c.b16 %v559, %v558
        %v574 = vpack.c.b16 %v561, %v560
        %v575 = vpack.c.b16 %v563, %v562
        %v576 = vpack.c.b16 %v565, %v564
        %v577 = vpack.c.b16 %v567, %v566
        %v578 = vpack.c.b16 %v569, %v568
        %v579 = vpack.c.b16 %v571, %v570
        %588 = vmatprep.subr.bf16.mxu0 0
        %589 = vmatpush1.bf16.msra.mxu0 %v572
        %590 = vmatprep.subr.bf16.mxu0 0
        %591 = vmatpush1.bf16.msra.mxu0 %v573
        %592 = vmatprep.subr.bf16.mxu0 0
        %593 = vmatpush1.bf16.msra.mxu0 %v574
        %594 = vmatprep.subr.bf16.mxu0 0
        %595 = vmatpush1.bf16.msra.mxu0 %v575
        %596 = vmatprep.subr.bf16.mxu0 0
        %597 = vmatpush1.bf16.msra.mxu0 %v576
        %598 = vmatprep.subr.bf16.mxu0 0
        %599 = vmatpush1.bf16.msra.mxu0 %v577
        %600 = vmatprep.subr.bf16.mxu0 0
        %601 = vmatpush1.bf16.msra.mxu0 %v578
        %602 = vmatprep.subr.bf16.mxu0 0
        %603 = vmatpush1.bf16.msra.mxu0 %v579
        %604 = vmatprep.subr.bf16.mxu0 0
        %605 = vmatpush1.bf16.msra.mxu0 0
        %606 = vmatprep.subr.bf16.mxu0 0
        %607 = vmatpush1.bf16.msra.mxu0 0
        %608 = vmatprep.subr.bf16.mxu0 0
        %609 = vmatpush1.bf16.msra.mxu0 0
        %610 = vmatprep.subr.bf16.mxu0 0
        %611 = vmatpush1.bf16.msra.mxu0 0
        %612 = vmatprep.subr.bf16.mxu0 0
        %613 = vmatpush1.bf16.msra.mxu0 0
        %614 = vmatprep.subr.bf16.mxu0 0
        %615 = vmatpush1.bf16.msra.mxu0 0
        %616 = vmatprep.subr.bf16.mxu0 0
        %617 = vmatpush1.bf16.msra.mxu0 0
        %618 = vmatprep.subr.bf16.mxu0 0
        %619 = vmatpush1.bf16.msra.mxu0 0
        %620 = vmatprep.mubr.bf16.mxu0 0
        %621 = vmatmul.mubr.bf16.gmra.mrb[0].mxu0 %v524
        %v622 = vpop.f32.mrb[0].mxu0
        %v623 = vadd.f32 0.0, %v622
        %v624 = vpop.f32.mrb[0].mxu0
        %v625 = vpop.f32.mrb[0].mxu0
        %v626 = vadd.f32 0.0, %v625
        %v627 = vpop.f32.mrb[0].mxu0
        %628 = vmatprep.mubr.bf16.mxu0 0
        %629 = vmatmul.mubr.bf16.gmra.mrb[0].mxu0 %v525
        %v630 = vpop.f32.mrb[0].mxu0
        %v631 = vadd.f32 0.0, %v630
        %v632 = vpop.f32.mrb[0].mxu0
        %v633 = vpop.f32.mrb[0].mxu0
        %v634 = vadd.f32 0.0, %v633
        %v635 = vpop.f32.mrb[0].mxu0
        %636 = vmatprep.mubr.bf16.mxu0 0
        %637 = vmatmul.mubr.bf16.gmra.mrb[0].mxu0 %v526
        %v638 = vpop.f32.mrb[0].mxu0
        %v639 = vadd.f32 0.0, %v638
        %v640 = vpop.f32.mrb[0].mxu0
        %v641 = vpop.f32.mrb[0].mxu0
        %v642 = vadd.f32 0.0, %v641
        %v643 = vpop.f32.mrb[0].mxu0
        %644 = vmatprep.mubr.bf16.mxu0 0
        %645 = vmatmul.mubr.bf16.gmra.mrb[0].mxu0 %v527
        %v646 = vpop.f32.mrb[0].mxu0
        %v647 = vadd.f32 0.0, %v646
        %v648 = vpop.f32.mrb[0].mxu0
        %v649 = vpop.f32.mrb[0].mxu0
        %v650 = vadd.f32 0.0, %v649
        %v651 = vpop.f32.mrb[0].mxu0
        %652 = vmatprep.mubr.bf16.mxu0 0
        %653 = vmatmul.mubr.bf16.gmra.mrb[0].mxu0 %v528
        %v654 = vpop.f32.mrb[0].mxu0
        %v655 = vadd.f32 0.0, %v654
        %v656 = vpop.f32.mrb[0].mxu0
        %v657 = vpop.f32.mrb[0].mxu0
        %v658 = vadd.f32 0.0, %v657
        %v659 = vpop.f32.mrb[0].mxu0
        %660 = vmatprep.mubr.bf16.mxu0 0
        %661 = vmatmul.mubr.bf16.gmra.mrb[0].mxu0 %v529
        %v662 = vpop.f32.mrb[0].mxu0
        %v663 = vadd.f32 0.0, %v662
        %v664 = vpop.f32.mrb[0].mxu0
        %v665 = vpop.f32.mrb[0].mxu0
        %v666 = vadd.f32 0.0, %v665
        %v667 = vpop.f32.mrb[0].mxu0
        %668 = vmatprep.mubr.bf16.mxu0 0
        %669 = vmatmul.mubr.bf16.gmra.mrb[0].mxu0 %v530
        %v670 = vpop.f32.mrb[0].mxu0
        %v671 = vadd.f32 0.0, %v670
        %v672 = vpop.f32.mrb[0].mxu0
        %v673 = vpop.f32.mrb[0].mxu0
        %v674 = vadd.f32 0.0, %v673
        %v675 = vpop.f32.mrb[0].mxu0
        %676 = vmatprep.mubr.bf16.mxu0 0
        %677 = vmatmul.mubr.bf16.gmra.mrb[0].mxu0 %v531
        %v678 = vpop.f32.mrb[0].mxu0
        %v679 = vadd.f32 0.0, %v678
        %v680 = vpop.f32.mrb[0].mxu0
        %v681 = vpop.f32.mrb[0].mxu0
        %v682 = vadd.f32 0.0, %v681
        %v683 = vpop.f32.mrb[0].mxu0
        %684 = vdwg.mxu0
        %v685 = vadd.f32 %v444, %v623
        %v686 = vadd.f32 %v445, %v626
        %v687 = vadd.f32 %v446, %v631
        %v688 = vadd.f32 %v447, %v634
        %v689 = vadd.f32 %v448, %v639
        %v690 = vadd.f32 %v449, %v642
        %v691 = vadd.f32 %v450, %v647
        %v692 = vadd.f32 %v451, %v650
        %v693 = vadd.f32 %v452, %v655
        %v694 = vadd.f32 %v453, %v658
        %v695 = vadd.f32 %v454, %v663
        %v696 = vadd.f32 %v455, %v666
        %v697 = vadd.f32 %v456, %v671
        %v698 = vadd.f32 %v457, %v674
        %v699 = vadd.f32 %v458, %v679
        %v700 = vadd.f32 %v459, %v682
        %vm701 = vcmask 523264
        %702 = vst.msk [vmem:[#allocation2] sm:$0xff] %vm701, %v685
        %703 = vst.msk [vmem:[#allocation2 + $0x8] sm:$0xff] %vm701, %v686
        %704 = vst.msk [vmem:[#allocation2 + $0x10] sm:$0xff] %vm701, %v687
        %705 = vst.msk [vmem:[#allocation2 + $0x18] sm:$0xff] %vm701, %v688
        %706 = vst.msk [vmem:[#allocation2 + $0x20] sm:$0xff] %vm701, %v689
        %707 = vst.msk [vmem:[#allocation2 + $0x28] sm:$0xff] %vm701, %v690
        %708 = vst.msk [vmem:[#allocation2 + $0x30] sm:$0xff] %vm701, %v691
        %709 = vst.msk [vmem:[#allocation2 + $0x38] sm:$0xff] %vm701, %v692
        %710 = vst.msk [vmem:[#allocation2 + $0x40] sm:$0xff] %vm701, %v693
        %711 = vst.msk [vmem:[#allocation2 + $0x48] sm:$0xff] %vm701, %v694
        %712 = vst.msk [vmem:[#allocation2 + $0x50] sm:$0xff] %vm701, %v695
        %713 = vst.msk [vmem:[#allocation2 + $0x58] sm:$0xff] %vm701, %v696
        %714 = vst.msk [vmem:[#allocation2 + $0x60] sm:$0xff] %vm701, %v697
        %715 = vst.msk [vmem:[#allocation2 + $0x68] sm:$0xff] %vm701, %v698
        %716 = vst.msk [vmem:[#allocation2 + $0x70] sm:$0xff] %vm701, %v699
        %717 = vst.msk [vmem:[#allocation2 + $0x78] sm:$0xff] %vm701, %v700
        %p718 = scmp.eq.s32.totalorder %s24, 1
        // Predicated region
        $region94: #{tpu_custom_call.1} parent=80 // pred_check
          %p719 = pneg %p718
        $region95: #{tpu_custom_call.1} parent=80 // pred_check_branch
          %721 = sbr.rel (%p719) target = $region97
        $region96: #{tpu_custom_call.1} parent=80 // pred_region
          %v722 = vld [vmem:[%s412] sm:$0xf]
          %v723 = vld [vmem:[%s412 + $0x4] sm:$0xf]
          %v724 = vld [vmem:[%s412 + $0x8] sm:$0xf]
          %v725 = vld [vmem:[%s412 + $0xc] sm:$0xf]
          %v726 = vld [vmem:[%s412 + $0x10] sm:$0xf]
          %v727 = vld [vmem:[%s412 + $0x14] sm:$0xf]
          %v728 = vld [vmem:[%s412 + $0x18] sm:$0xf]
          %v729 = vld [vmem:[%s412 + $0x1c] sm:$0xf]
          %v730 = vld [vmem:[%s412 + $0x20] sm:$0xf]
          %v731 = vld [vmem:[%s412 + $0x24] sm:$0xf]
          %v732 = vld [vmem:[%s412 + $0x28] sm:$0xf]
          %v733 = vld [vmem:[%s412 + $0x2c] sm:$0xf]
          %v734 = vld [vmem:[%s412 + $0x30] sm:$0xf]
          %v735 = vld [vmem:[%s412 + $0x34] sm:$0xf]
          %v736 = vld [vmem:[%s412 + $0x38] sm:$0xf]
          %v737 = vld [vmem:[%s412 + $0x3c] sm:$0xf]
          %v738 = vld [vmem:[%s3] sm:$0xf]
          %v739 = vld [vmem:[%s3 + $0x4] sm:$0xf]
          %v740 = vld [vmem:[%s3 + $0x8] sm:$0xf]
          %v741 = vld [vmem:[%s3 + $0xc] sm:$0xf]
          %v742 = vld [vmem:[%s3 + $0x10] sm:$0xf]
          %v743 = vld [vmem:[%s3 + $0x14] sm:$0xf]
          %v744 = vld [vmem:[%s3 + $0x18] sm:$0xf]
          %v745 = vld [vmem:[%s3 + $0x1c] sm:$0xf]
          %v746 = vld [vmem:[#allocation2] sm:$0xff]
          %v747 = vld [vmem:[#allocation2 + $0x8] sm:$0xff]
          %v748 = vld [vmem:[#allocation2 + $0x10] sm:$0xff]
          %v749 = vld [vmem:[#allocation2 + $0x18] sm:$0xff]
          %v750 = vld [vmem:[#allocation2 + $0x20] sm:$0xff]
          %v751 = vld [vmem:[#allocation2 + $0x28] sm:$0xff]
          %v752 = vld [vmem:[#allocation2 + $0x30] sm:$0xff]
          %v753 = vld [vmem:[#allocation2 + $0x38] sm:$0xff]
          %v754 = vld [vmem:[#allocation2 + $0x40] sm:$0xff]
          %v755 = vld [vmem:[#allocation2 + $0x48] sm:$0xff]
          %v756 = vld [vmem:[#allocation2 + $0x50] sm:$0xff]
          %v757 = vld [vmem:[#allocation2 + $0x58] sm:$0xff]
          %v758 = vld [vmem:[#allocation2 + $0x60] sm:$0xff]
          %v759 = vld [vmem:[#allocation2 + $0x68] sm:$0xff]
          %v760 = vld [vmem:[#allocation2 + $0x70] sm:$0xff]
          %v761 = vld [vmem:[#allocation2 + $0x78] sm:$0xff]
          %v762 = vpack.c.bf16 %v747, %v746
          %v763 = vpack.c.bf16 %v749, %v748
          %v764 = vpack.c.bf16 %v751, %v750
          %v765 = vpack.c.bf16 %v753, %v752
          %v766 = vpack.c.bf16 %v755, %v754
          %v767 = vpack.c.bf16 %v757, %v756
          %v768 = vpack.c.bf16 %v759, %v758
          %v769 = vpack.c.bf16 %v761, %v760
          %v770 = vld [vmem:[#allocation4] sm:$0xf]
          %v771 = vld [vmem:[#allocation4 + $0x4] sm:$0xf]
          %v772 = vld [vmem:[#allocation4 + $0x8] sm:$0xf]
          %v773 = vld [vmem:[#allocation4 + $0xc] sm:$0xf]
          %v774 = vld [vmem:[#allocation4 + $0x10] sm:$0xf]
          %v775 = vld [vmem:[#allocation4 + $0x14] sm:$0xf]
          %v776 = vld [vmem:[#allocation4 + $0x18] sm:$0xf]
          %v777 = vld [vmem:[#allocation4 + $0x1c] sm:$0xf]
          %v786 = vunpack.c.l.b16 %v770
          %v787 = vunpack.c.l.b16 %v771
          %v788 = vunpack.c.l.b16 %v772
          %v789 = vunpack.c.l.b16 %v773
          %v790 = vunpack.c.l.b16 %v774
          %v791 = vunpack.c.l.b16 %v775
          %v792 = vunpack.c.l.b16 %v776
          %v793 = vunpack.c.l.b16 %v777
          %v794 = vpack.c.b16 %v787, %v786
          %v795 = vpack.c.b16 %v789, %v788
          %v796 = vpack.c.b16 %v791, %v790
          %v797 = vpack.c.b16 %v793, %v792
          %v803 = vsel %vm701, %v762, 0
          %v806 = vsel %vm701, %v763, 0
          %v809 = vsel %vm701, %v764, 0
          %v812 = vsel %vm701, %v765, 0
          %v815 = vsel %vm701, %v766, 0
          %v818 = vsel %vm701, %v767, 0
          %v821 = vsel %vm701, %v768, 0
          %v824 = vsel %vm701, %v769, 0
          %826 = vmatprep.subr.bf16.mxu0 0
          %827 = vmatpush1.bf16.msra.mxu0 %v794
          %828 = vmatprep.subr.bf16.mxu0 0
          %829 = vmatpush1.bf16.msra.mxu0 %v795
          %830 = vmatprep.subr.bf16.mxu0 0
          %831 = vmatpush1.bf16.msra.mxu0 %v796
          %832 = vmatprep.subr.bf16.mxu0 0
          %833 = vmatpush1.bf16.msra.mxu0 %v797
          %834 = vmatprep.subr.bf16.mxu0 0
          %835 = vmatpush1.bf16.msra.mxu0 0
          %836 = vmatprep.subr.bf16.mxu0 0
          %837 = vmatpush1.bf16.msra.mxu0 0
          %838 = vmatprep.subr.bf16.mxu0 0
          %839 = vmatpush1.bf16.msra.mxu0 0
          %840 = vmatprep.subr.bf16.mxu0 0
          %841 = vmatpush1.bf16.msra.mxu0 0
          %842 = vmatprep.subr.bf16.mxu0 0
          %843 = vmatpush1.bf16.msra.mxu0 0
          %844 = vmatprep.subr.bf16.mxu0 0
          %845 = vmatpush1.bf16.msra.mxu0 0
          %846 = vmatprep.subr.bf16.mxu0 0
          %847 = vmatpush1.bf16.msra.mxu0 0
          %848 = vmatprep.subr.bf16.mxu0 0
          %849 = vmatpush1.bf16.msra.mxu0 0
          %850 = vmatprep.subr.bf16.mxu0 0
          %851 = vmatpush1.bf16.msra.mxu0 0
          %852 = vmatprep.subr.bf16.mxu0 0
          %853 = vmatpush1.bf16.msra.mxu0 0
          %854 = vmatprep.subr.bf16.mxu0 0
          %855 = vmatpush1.bf16.msra.mxu0 0
          %856 = vmatprep.subr.bf16.mxu0 0
          %857 = vmatpush1.bf16.msra.mxu0 0
          %858 = vmatprep.mubr.bf16.mxu0 0
          %859 = vmatmul.mubr.bf16.gmra.mrb[0].mxu0 %v803
          %v860 = vpop.f32.mrb[0].mxu0
          %v861 = vadd.f32 0.0, %v860
          %v862 = vpop.f32.mrb[0].mxu0
          %v863 = vpop.f32.mrb[0].mxu0
          %v864 = vadd.f32 0.0, %v863
          %v865 = vpop.f32.mrb[0].mxu0
          %866 = vmatprep.mubr.bf16.mxu0 0
          %867 = vmatmul.mubr.bf16.gmra.mrb[0].mxu0 %v806
          %v868 = vpop.f32.mrb[0].mxu0
          %v869 = vadd.f32 0.0, %v868
          %v870 = vpop.f32.mrb[0].mxu0
          %v871 = vpop.f32.mrb[0].mxu0
          %v872 = vadd.f32 0.0, %v871
          %v873 = vpop.f32.mrb[0].mxu0
          %874 = vmatprep.mubr.bf16.mxu0 0
          %875 = vmatmul.mubr.bf16.gmra.mrb[0].mxu0 %v809
          %v876 = vpop.f32.mrb[0].mxu0
          %v877 = vadd.f32 0.0, %v876
          %v878 = vpop.f32.mrb[0].mxu0
          %v879 = vpop.f32.mrb[0].mxu0
          %v880 = vadd.f32 0.0, %v879
          %v881 = vpop.f32.mrb[0].mxu0
          %882 = vmatprep.mubr.bf16.mxu0 0
          %883 = vmatmul.mubr.bf16.gmra.mrb[0].mxu0 %v812
          %v884 = vpop.f32.mrb[0].mxu0
          %v885 = vadd.f32 0.0, %v884
          %v886 = vpop.f32.mrb[0].mxu0
          %v887 = vpop.f32.mrb[0].mxu0
          %v888 = vadd.f32 0.0, %v887
          %v889 = vpop.f32.mrb[0].mxu0
          %890 = vmatprep.mubr.bf16.mxu0 0
          %891 = vmatmul.mubr.bf16.gmra.mrb[0].mxu0 %v815
          %v892 = vpop.f32.mrb[0].mxu0
          %v893 = vadd.f32 0.0, %v892
          %v894 = vpop.f32.mrb[0].mxu0
          %v895 = vpop.f32.mrb[0].mxu0
          %v896 = vadd.f32 0.0, %v895
          %v897 = vpop.f32.mrb[0].mxu0
          %898 = vmatprep.mubr.bf16.mxu0 0
          %899 = vmatmul.mubr.bf16.gmra.mrb[0].mxu0 %v818
          %v900 = vpop.f32.mrb[0].mxu0
          %v901 = vadd.f32 0.0, %v900
          %v902 = vpop.f32.mrb[0].mxu0
          %v903 = vpop.f32.mrb[0].mxu0
          %v904 = vadd.f32 0.0, %v903
          %v905 = vpop.f32.mrb[0].mxu0
          %906 = vmatprep.mubr.bf16.mxu0 0
          %907 = vmatmul.mubr.bf16.gmra.mrb[0].mxu0 %v821
          %v908 = vpop.f32.mrb[0].mxu0
          %v909 = vadd.f32 0.0, %v908
          %v910 = vpop.f32.mrb[0].mxu0
          %v911 = vpop.f32.mrb[0].mxu0
          %v912 = vadd.f32 0.0, %v911
          %v913 = vpop.f32.mrb[0].mxu0
          %914 = vmatprep.mubr.bf16.mxu0 0
          %915 = vmatmul.mubr.bf16.gmra.mrb[0].mxu0 %v824
          %v916 = vpop.f32.mrb[0].mxu0
          %v917 = vadd.f32 0.0, %v916
          %v918 = vpop.f32.mrb[0].mxu0
          %v919 = vpop.f32.mrb[0].mxu0
          %v920 = vadd.f32 0.0, %v919
          %v921 = vpop.f32.mrb[0].mxu0
          %922 = vdwg.mxu0
          %v939 = vunpack.c.l.b16 %v722
          %v940 = vunpack.c.l.b16 %v723
          %v941 = vunpack.c.l.b16 %v724
          %v942 = vunpack.c.l.b16 %v725
          %v943 = vunpack.c.l.b16 %v726
          %v944 = vunpack.c.l.b16 %v727
          %v945 = vunpack.c.l.b16 %v728
          %v946 = vunpack.c.l.b16 %v729
          %v947 = vunpack.c.l.b16 %v730
          %v948 = vunpack.c.l.b16 %v731
          %v949 = vunpack.c.l.b16 %v732
          %v950 = vunpack.c.l.b16 %v733
          %v951 = vunpack.c.l.b16 %v734
          %v952 = vunpack.c.l.b16 %v735
          %v953 = vunpack.c.l.b16 %v736
          %v954 = vunpack.c.l.b16 %v737
          %v955 = vpack.c.b16 %v940, %v939
          %v956 = vpack.c.b16 %v942, %v941
          %v957 = vpack.c.b16 %v944, %v943
          %v958 = vpack.c.b16 %v946, %v945
          %v959 = vpack.c.b16 %v948, %v947
          %v960 = vpack.c.b16 %v950, %v949
          %v961 = vpack.c.b16 %v952, %v951
          %v962 = vpack.c.b16 %v954, %v953
          %v971 = vunpack.c.l.b16 %v738
          %v972 = vunpack.c.l.b16 %v739
          %v973 = vunpack.c.l.b16 %v740
          %v974 = vunpack.c.l.b16 %v741
          %v975 = vunpack.c.l.b16 %v742
          %v976 = vunpack.c.l.b16 %v743
          %v977 = vunpack.c.l.b16 %v744
          %v978 = vunpack.c.l.b16 %v745
          %v979 = vpack.c.b16 %v972, %v971
          %v980 = vpack.c.b16 %v974, %v973
          %v981 = vpack.c.b16 %v976, %v975
          %v982 = vpack.c.b16 %v978, %v977
          %v988 = vsel %vm701, %v955, 0
          %v991 = vsel %vm701, %v956, 0
          %v994 = vsel %vm701, %v957, 0
          %v997 = vsel %vm701, %v958, 0
          %v1000 = vsel %vm701, %v959, 0
          %v1003 = vsel %vm701, %v960, 0
          %v1006 = vsel %vm701, %v961, 0
          %v1009 = vsel %vm701, %v962, 0
          %1011 = vmatprep.subr.bf16.mxu0 0
          %1012 = vmatpush1.bf16.msra.mxu0 %v979
          %1013 = vmatprep.subr.bf16.mxu0 0
          %1014 = vmatpush1.bf16.msra.mxu0 %v980
          %1015 = vmatprep.subr.bf16.mxu0 0
          %1016 = vmatpush1.bf16.msra.mxu0 %v981
          %1017 = vmatprep.subr.bf16.mxu0 0
          %1018 = vmatpush1.bf16.msra.mxu0 %v982
          %1019 = vmatprep.subr.bf16.mxu0 0
          %1020 = vmatpush1.bf16.msra.mxu0 0
          %1021 = vmatprep.subr.bf16.mxu0 0
          %1022 = vmatpush1.bf16.msra.mxu0 0
          %1023 = vmatprep.subr.bf16.mxu0 0
          %1024 = vmatpush1.bf16.msra.mxu0 0
          %1025 = vmatprep.subr.bf16.mxu0 0
          %1026 = vmatpush1.bf16.msra.mxu0 0
          %1027 = vmatprep.subr.bf16.mxu0 0
          %1028 = vmatpush1.bf16.msra.mxu0 0
          %1029 = vmatprep.subr.bf16.mxu0 0
          %1030 = vmatpush1.bf16.msra.mxu0 0
          %1031 = vmatprep.subr.bf16.mxu0 0
          %1032 = vmatpush1.bf16.msra.mxu0 0
          %1033 = vmatprep.subr.bf16.mxu0 0
          %1034 = vmatpush1.bf16.msra.mxu0 0
          %1035 = vmatprep.subr.bf16.mxu0 0
          %1036 = vmatpush1.bf16.msra.mxu0 0
          %1037 = vmatprep.subr.bf16.mxu0 0
          %1038 = vmatpush1.bf16.msra.mxu0 0
          %1039 = vmatprep.subr.bf16.mxu0 0
          %1040 = vmatpush1.bf16.msra.mxu0 0
          %1041 = vmatprep.subr.bf16.mxu0 0
          %1042 = vmatpush1.bf16.msra.mxu0 0
          %1043 = vmatprep.mubr.bf16.mxu0 0
          %1044 = vmatmul.mubr.bf16.gmra.mrb[0].mxu0 %v988
          %v1045 = vpop.f32.mrb[0].mxu0
          %v1046 = vadd.f32 %v861, %v1045
          %v1047 = vpop.f32.mrb[0].mxu0
          %v1048 = vpop.f32.mrb[0].mxu0
          %v1049 = vadd.f32 %v864, %v1048
          %v1050 = vpop.f32.mrb[0].mxu0
          %1051 = vmatprep.mubr.bf16.mxu0 0
          %1052 = vmatmul.mubr.bf16.gmra.mrb[0].mxu0 %v991
          %v1053 = vpop.f32.mrb[0].mxu0
          %v1054 = vadd.f32 %v869, %v1053
          %v1055 = vpop.f32.mrb[0].mxu0
          %v1056 = vpop.f32.mrb[0].mxu0
          %v1057 = vadd.f32 %v872, %v1056
          %v1058 = vpop.f32.mrb[0].mxu0
          %1059 = vmatprep.mubr.bf16.mxu0 0
          %1060 = vmatmul.mubr.bf16.gmra.mrb[0].mxu0 %v994
          %v1061 = vpop.f32.mrb[0].mxu0
          %v1062 = vadd.f32 %v877, %v1061
          %v1063 = vpop.f32.mrb[0].mxu0
          %v1064 = vpop.f32.mrb[0].mxu0
          %v1065 = vadd.f32 %v880, %v1064
          %v1066 = vpop.f32.mrb[0].mxu0
          %1067 = vmatprep.mubr.bf16.mxu0 0
          %1068 = vmatmul.mubr.bf16.gmra.mrb[0].mxu0 %v997
          %v1069 = vpop.f32.mrb[0].mxu0
          %v1070 = vadd.f32 %v885, %v1069
          %v1071 = vpop.f32.mrb[0].mxu0
          %v1072 = vpop.f32.mrb[0].mxu0
          %v1073 = vadd.f32 %v888, %v1072
          %v1074 = vpop.f32.mrb[0].mxu0
          %1075 = vmatprep.mubr.bf16.mxu0 0
          %1076 = vmatmul.mubr.bf16.gmra.mrb[0].mxu0 %v1000
          %v1077 = vpop.f32.mrb[0].mxu0
          %v1078 = vadd.f32 %v893, %v1077
          %v1079 = vpop.f32.mrb[0].mxu0
          %v1080 = vpop.f32.mrb[0].mxu0
          %v1081 = vadd.f32 %v896, %v1080
          %v1082 = vpop.f32.mrb[0].mxu0
          %1083 = vmatprep.mubr.bf16.mxu0 0
          %1084 = vmatmul.mubr.bf16.gmra.mrb[0].mxu0 %v1003
          %v1085 = vpop.f32.mrb[0].mxu0
          %v1086 = vadd.f32 %v901, %v1085
          %v1087 = vpop.f32.mrb[0].mxu0
          %v1088 = vpop.f32.mrb[0].mxu0
          %v1089 = vadd.f32 %v904, %v1088
          %v1090 = vpop.f32.mrb[0].mxu0
          %1091 = vmatprep.mubr.bf16.mxu0 0
          %1092 = vmatmul.mubr.bf16.gmra.mrb[0].mxu0 %v1006
          %v1093 = vpop.f32.mrb[0].mxu0
          %v1094 = vadd.f32 %v909, %v1093
          %v1095 = vpop.f32.mrb[0].mxu0
          %v1096 = vpop.f32.mrb[0].mxu0
          %v1097 = vadd.f32 %v912, %v1096
          %v1098 = vpop.f32.mrb[0].mxu0
          %1099 = vmatprep.mubr.bf16.mxu0 0
          %1100 = vmatmul.mubr.bf16.gmra.mrb[0].mxu0 %v1009
          %v1101 = vpop.f32.mrb[0].mxu0
          %v1102 = vadd.f32 %v917, %v1101
          %v1103 = vpop.f32.mrb[0].mxu0
          %v1104 = vpop.f32.mrb[0].mxu0
          %v1105 = vadd.f32 %v920, %v1104
          %v1106 = vpop.f32.mrb[0].mxu0
          %1107 = vdwg.mxu0
          %v1108 = vmax.f32 %v1046, 0.0
          %v1109 = vmax.f32 %v1049, 0.0
          %v1110 = vmax.f32 %v1054, 0.0
          %v1111 = vmax.f32 %v1057, 0.0
          %v1112 = vmax.f32 %v1062, 0.0
          %v1113 = vmax.f32 %v1065, 0.0
          %v1114 = vmax.f32 %v1070, 0.0
          %v1115 = vmax.f32 %v1073, 0.0
          %v1116 = vmax.f32 %v1078, 0.0
          %v1117 = vmax.f32 %v1081, 0.0
          %v1118 = vmax.f32 %v1086, 0.0
          %v1119 = vmax.f32 %v1089, 0.0
          %v1120 = vmax.f32 %v1094, 0.0
          %v1121 = vmax.f32 %v1097, 0.0
          %v1122 = vmax.f32 %v1102, 0.0
          %v1123 = vmax.f32 %v1105, 0.0
          %v1124 = vpack.c.bf16 %v1109, %v1108
          %v1125 = vpack.c.bf16 %v1111, %v1110
          %v1126 = vpack.c.bf16 %v1113, %v1112
          %v1127 = vpack.c.bf16 %v1115, %v1114
          %v1128 = vpack.c.bf16 %v1117, %v1116
          %v1129 = vpack.c.bf16 %v1119, %v1118
          %v1130 = vpack.c.bf16 %v1121, %v1120
          %v1131 = vpack.c.bf16 %v1123, %v1122
          %v1132 = vld [vmem:[%s5] sm:$0xf]
          %v1133 = vld [vmem:[%s5 + $0x4] sm:$0xf]
          %v1134 = vld [vmem:[%s5 + $0x8] sm:$0xf]
          %v1135 = vld [vmem:[%s5 + $0xc] sm:$0xf]
          %v1136 = vld [vmem:[%s5 + $0x10] sm:$0xf]
          %v1137 = vld [vmem:[%s5 + $0x14] sm:$0xf]
          %v1138 = vld [vmem:[%s5 + $0x18] sm:$0xf]
          %v1139 = vld [vmem:[%s5 + $0x1c] sm:$0xf]
          %v1140 = vld [vmem:[%s5 + $0x20] sm:$0xf]
          %v1141 = vld [vmem:[%s5 + $0x24] sm:$0xf]
          %v1142 = vld [vmem:[%s5 + $0x28] sm:$0xf]
          %v1143 = vld [vmem:[%s5 + $0x2c] sm:$0xf]
          %v1144 = vld [vmem:[%s5 + $0x30] sm:$0xf]
          %v1145 = vld [vmem:[%s5 + $0x34] sm:$0xf]
          %v1146 = vld [vmem:[%s5 + $0x38] sm:$0xf]
          %v1147 = vld [vmem:[%s5 + $0x3c] sm:$0xf]
          %v1164 = vunpack.c.l.b16 %v1132
          %v1165 = vunpack.c.l.b16 %v1133
          %v1166 = vunpack.c.l.b16 %v1134
          %v1167 = vunpack.c.l.b16 %v1135
          %v1168 = vunpack.c.l.b16 %v1136
          %v1169 = vunpack.c.l.b16 %v1137
          %v1170 = vunpack.c.l.b16 %v1138
          %v1171 = vunpack.c.l.b16 %v1139
          %v1172 = vunpack.c.l.b16 %v1140
          %v1173 = vunpack.c.l.b16 %v1141
          %v1174 = vunpack.c.l.b16 %v1142
          %v1175 = vunpack.c.l.b16 %v1143
          %v1176 = vunpack.c.l.b16 %v1144
          %v1177 = vunpack.c.l.b16 %v1145
          %v1178 = vunpack.c.l.b16 %v1146
          %v1179 = vunpack.c.l.b16 %v1147
          %v1180 = vpack.c.b16 %v1165, %v1164
          %v1181 = vpack.c.b16 %v1167, %v1166
          %v1182 = vpack.c.b16 %v1169, %v1168
          %v1183 = vpack.c.b16 %v1171, %v1170
          %v1184 = vpack.c.b16 %v1173, %v1172
          %v1185 = vpack.c.b16 %v1175, %v1174
          %v1186 = vpack.c.b16 %v1177, %v1176
          %v1187 = vpack.c.b16 %v1179, %v1178
          %1196 = vmatprep.subr.bf16.mxu0 0
          %1197 = vmatpush1.bf16.msra.mxu0 %v1180
          %1198 = vmatprep.subr.bf16.mxu0 0
          %1199 = vmatpush1.bf16.msra.mxu0 %v1181
          %1200 = vmatprep.subr.bf16.mxu0 0
          %1201 = vmatpush1.bf16.msra.mxu0 %v1182
          %1202 = vmatprep.subr.bf16.mxu0 0
          %1203 = vmatpush1.bf16.msra.mxu0 %v1183
          %1204 = vmatprep.subr.bf16.mxu0 0
          %1205 = vmatpush1.bf16.msra.mxu0 %v1184
          %1206 = vmatprep.subr.bf16.mxu0 0
          %1207 = vmatpush1.bf16.msra.mxu0 %v1185
          %1208 = vmatprep.subr.bf16.mxu0 0
          %1209 = vmatpush1.bf16.msra.mxu0 %v1186
          %1210 = vmatprep.subr.bf16.mxu0 0
          %1211 = vmatpush1.bf16.msra.mxu0 %v1187
          %1212 = vmatprep.subr.bf16.mxu0 0
          %1213 = vmatpush1.bf16.msra.mxu0 0
          %1214 = vmatprep.subr.bf16.mxu0 0
          %1215 = vmatpush1.bf16.msra.mxu0 0
          %1216 = vmatprep.subr.bf16.mxu0 0
          %1217 = vmatpush1.bf16.msra.mxu0 0
          %1218 = vmatprep.subr.bf16.mxu0 0
          %1219 = vmatpush1.bf16.msra.mxu0 0
          %1220 = vmatprep.subr.bf16.mxu0 0
          %1221 = vmatpush1.bf16.msra.mxu0 0
          %1222 = vmatprep.subr.bf16.mxu0 0
          %1223 = vmatpush1.bf16.msra.mxu0 0
          %1224 = vmatprep.subr.bf16.mxu0 0
          %1225 = vmatpush1.bf16.msra.mxu0 0
          %1226 = vmatprep.subr.bf16.mxu0 0
          %1227 = vmatpush1.bf16.msra.mxu0 0
          %1228 = vmatprep.mubr.bf16.mxu0 0
          %1229 = vmatmul.mubr.bf16.gmra.mrb[0].mxu0 %v1124
          %v1230 = vpop.f32.mrb[0].mxu0
          %v1231 = vadd.f32 0.0, %v1230
          %v1232 = vpop.f32.mrb[0].mxu0
          %v1233 = vpop.f32.mrb[0].mxu0
          %v1234 = vadd.f32 0.0, %v1233
          %v1235 = vpop.f32.mrb[0].mxu0
          %1236 = vmatprep.mubr.bf16.mxu0 0
          %1237 = vmatmul.mubr.bf16.gmra.mrb[0].mxu0 %v1125
          %v1238 = vpop.f32.mrb[0].mxu0
          %v1239 = vadd.f32 0.0, %v1238
          %v1240 = vpop.f32.mrb[0].mxu0
          %v1241 = vpop.f32.mrb[0].mxu0
          %v1242 = vadd.f32 0.0, %v1241
          %v1243 = vpop.f32.mrb[0].mxu0
          %1244 = vmatprep.mubr.bf16.mxu0 0
          %1245 = vmatmul.mubr.bf16.gmra.mrb[0].mxu0 %v1126
          %v1246 = vpop.f32.mrb[0].mxu0
          %v1247 = vadd.f32 0.0, %v1246
          %v1248 = vpop.f32.mrb[0].mxu0
          %v1249 = vpop.f32.mrb[0].mxu0
          %v1250 = vadd.f32 0.0, %v1249
          %v1251 = vpop.f32.mrb[0].mxu0
          %1252 = vmatprep.mubr.bf16.mxu0 0
          %1253 = vmatmul.mubr.bf16.gmra.mrb[0].mxu0 %v1127
          %v1254 = vpop.f32.mrb[0].mxu0
          %v1255 = vadd.f32 0.0, %v1254
          %v1256 = vpop.f32.mrb[0].mxu0
          %v1257 = vpop.f32.mrb[0].mxu0
          %v1258 = vadd.f32 0.0, %v1257
          %v1259 = vpop.f32.mrb[0].mxu0
          %1260 = vmatprep.mubr.bf16.mxu0 0
          %1261 = vmatmul.mubr.bf16.gmra.mrb[0].mxu0 %v1128
          %v1262 = vpop.f32.mrb[0].mxu0
          %v1263 = vadd.f32 0.0, %v1262
          %v1264 = vpop.f32.mrb[0].mxu0
          %v1265 = vpop.f32.mrb[0].mxu0
          %v1266 = vadd.f32 0.0, %v1265
          %v1267 = vpop.f32.mrb[0].mxu0
          %1268 = vmatprep.mubr.bf16.mxu0 0
          %1269 = vmatmul.mubr.bf16.gmra.mrb[0].mxu0 %v1129
          %v1270 = vpop.f32.mrb[0].mxu0
          %v1271 = vadd.f32 0.0, %v1270
          %v1272 = vpop.f32.mrb[0].mxu0
          %v1273 = vpop.f32.mrb[0].mxu0
          %v1274 = vadd.f32 0.0, %v1273
          %v1275 = vpop.f32.mrb[0].mxu0
          %1276 = vmatprep.mubr.bf16.mxu0 0
          %1277 = vmatmul.mubr.bf16.gmra.mrb[0].mxu0 %v1130
          %v1278 = vpop.f32.mrb[0].mxu0
          %v1279 = vadd.f32 0.0, %v1278
          %v1280 = vpop.f32.mrb[0].mxu0
          %v1281 = vpop.f32.mrb[0].mxu0
          %v1282 = vadd.f32 0.0, %v1281
          %v1283 = vpop.f32.mrb[0].mxu0
          %1284 = vmatprep.mubr.bf16.mxu0 0
          %1285 = vmatmul.mubr.bf16.gmra.mrb[0].mxu0 %v1131
          %v1286 = vpop.f32.mrb[0].mxu0
          %v1287 = vadd.f32 0.0, %v1286
          %v1288 = vpop.f32.mrb[0].mxu0
          %v1289 = vpop.f32.mrb[0].mxu0
          %v1290 = vadd.f32 0.0, %v1289
          %v1291 = vpop.f32.mrb[0].mxu0
          %1292 = vdwg.mxu0
          %1293 = vst [vmem:[#allocation7] sm:$0xff] %v1231
          %1294 = vst [vmem:[#allocation7 + $0x8] sm:$0xff] %v1234
          %1295 = vst [vmem:[#allocation7 + $0x10] sm:$0xff] %v1239
          %1296 = vst [vmem:[#allocation7 + $0x18] sm:$0xff] %v1242
          %1297 = vst [vmem:[#allocation7 + $0x20] sm:$0xff] %v1247
          %1298 = vst [vmem:[#allocation7 + $0x28] sm:$0xff] %v1250
          %1299 = vst [vmem:[#allocation7 + $0x30] sm:$0xff] %v1255
          %1300 = vst [vmem:[#allocation7 + $0x38] sm:$0xff] %v1258
          %1301 = vst [vmem:[#allocation7 + $0x40] sm:$0xff] %v1263
          %1302 = vst [vmem:[#allocation7 + $0x48] sm:$0xff] %v1266
          %1303 = vst [vmem:[#allocation7 + $0x50] sm:$0xff] %v1271
          %1304 = vst [vmem:[#allocation7 + $0x58] sm:$0xff] %v1274
          %1305 = vst [vmem:[#allocation7 + $0x60] sm:$0xff] %v1279
          %1306 = vst [vmem:[#allocation7 + $0x68] sm:$0xff] %v1282
          %1307 = vst [vmem:[#allocation7 + $0x70] sm:$0xff] %v1287
          %1308 = vst [vmem:[#allocation7 + $0x78] sm:$0xff] %v1290
        $region97: #{tpu_custom_call.1} parent=80 // pred_fallthru
          _
        // Predicated region
        $region98: #{tpu_custom_call.1} parent=80 // pred_check
          %p1309 = pneg %p192
        $region99: #{tpu_custom_call.1} parent=80 // pred_check_branch
          %1311 = sbr.rel (%p1309) target = $region101
        $region100: #{tpu_custom_call.1} parent=80 // pred_region
          %s1312 = smul.u32 16, %s23
          %s1314 = ssub.s32 2048, 2048
          %1315 = vsyncadd [#allocation6], %s1314
          %s1316 = smul.addr %s1312, 128
          %s1317 = scalar_lea.hbm %s6, %s1316
          %s1318 = sshll.u32 [#allocation7], 4
          %s1319 = int_to_ptr.vmem [resolvable:$true] %s1318
          %1324 = dma.vmem_to_hbm [thread:$0]  %s1319, 2048, %s1317, [#allocation6], 128, 128, 8
        $region101: #{tpu_custom_call.1} parent=80 // pred_fallthru
          _
        // Predicated region
        $region102: #{tpu_custom_call.1} parent=80 // pred_check
          %p1325 = pneg %p192
        $region103: #{tpu_custom_call.1} parent=80 // pred_check_branch
          %1327 = sbr.rel (%p1325) target = $region105
        $region104: #{tpu_custom_call.1} parent=80 // pred_region
          %1328 = dma.done [#allocation6], 2048
        $region105: #{tpu_custom_call.1} parent=80 // pred_fallthru
          _
      $region81: #{tpu_custom_call.1} parent=5 // pred_fallthru
        _
      %p1329 = scmp.le.s32.totalorder 2, %s14
      // Predicated region
      $region106: #{tpu_custom_call.1} parent=5 // pred_check
        %p1330 = pneg %p1329
      $region107: #{tpu_custom_call.1} parent=5 // pred_check_branch
        %1332 = sbr.rel (%p1330) target = $region109
      $region108: #{tpu_custom_call.1} parent=5 // pred_region
        %s1333 = ssub.s32 %s14, 2
      $region109: #{tpu_custom_call.1} parent=5 // pred_fallthru
        _
    $region6: #{tpu_custom_call.1} parent=1 // loop_footer
      %s18 = sadd.s32 1, %s14
    $region7: #{tpu_custom_call.1} parent=1 // loop_footer_branch
      %13 = sbr.rel target = $region3
    $region8: #{tpu_custom_call.1} parent=1 // loop_exit
      _
    %1334 = vsyncpa [#allocation5], 1
    %s1335 = scalar_lea.sflag [#allocation5], 1
    %1336 = vsyncpa %s1335, 1
    %1337 = vsyncpa [#allocation6], 1
    %s1338 = scalar_lea.sflag [#allocation6], 1
    %1339 = vsyncpa %s1338, 1

</llo_original>
